<compile_context>
chip_gen: v7x
topology: tpu7x:2x2x1
jax: 0.10.0
libtpu: 0.0.40
codegen_flags: <defaults>
</compile_context>

<pallas_src>
import functools

import jax
import jax.numpy as jnp
from jax import lax
from jax.experimental import pallas as pl
from jax.experimental.pallas import tpu as pltpu


def _decoder_kernel(x_ref, o_ref, *, mean, std, grid_size, label_h, tile_h):
    """x_ref: (1, 6, TILE_H, W)  ->  o_ref: (1, 8, TILE_H, W)."""
    _, _, th, w = x_ref.shape
    x = x_ref[...].astype(jnp.float32)

    # ---- per-channel denormalization (constants folded at trace time) ----
    cos_t = x[:, 0] * std[0] + mean[0]
    sin_t = x[:, 1] * std[1] + mean[1]
    dx    = x[:, 2] * std[2] + mean[2]
    dy    = x[:, 3] * std[3] + mean[3]
    log_w = x[:, 4] * std[4] + mean[4]
    log_l = x[:, 5] * std[5] + mean[5]

    # ---- theta = atan2(sin, cos); cos_t = cos(theta); sin_t = sin(theta) ----
    # Equivalent to unit-normalizing the (cos, sin) vector (exact except at 0,0).
    inv_r = lax.rsqrt(cos_t * cos_t + sin_t * sin_t)
    cos_t = cos_t * inv_r
    sin_t = sin_t * inv_r

    box_w = jnp.exp(log_w)
    box_l = jnp.exp(log_l)

    # ---- metric pixel grid for this row tile ----
    row0 = pl.program_id(1) * tile_h
    rows = (lax.broadcasted_iota(jnp.int32, (th, w), 0) + row0).astype(jnp.float32)
    cols = lax.broadcasted_iota(jnp.int32, (th, w), 1).astype(jnp.float32)
    yy = (rows - 0.5 * label_h) * grid_size        # y = arange(-H/2, H/2)*grid
    xx = cols * grid_size                          # x = arange(W)*grid

    centre_y = yy[None] + dy                       # (1, TILE_H, W)
    centre_x = xx[None] + dx

    hl_c = 0.5 * box_l * cos_t
    hl_s = 0.5 * box_l * sin_t
    hw_c = 0.5 * box_w * cos_t
    hw_s = 0.5 * box_w * sin_t

    out = jnp.stack([
        centre_x - hl_c - hw_s,   # rear_left_x
        centre_y - hl_s + hw_c,   # rear_left_y
        centre_x - hl_c + hw_s,   # rear_right_x
        centre_y - hl_s - hw_c,   # rear_right_y
        centre_x + hl_c + hw_s,   # front_right_x
        centre_y + hl_s - hw_c,   # front_right_y
        centre_x + hl_c - hw_s,   # front_left_x
        centre_y + hl_s + hw_c,   # front_left_y
    ], axis=1)                                     # (1, 8, TILE_H, W)

    o_ref[...] = out.astype(o_ref.dtype)


def decoder_forward(x, *, target_mean, target_std_dev, grid_size, labels_shape,
                    tile_h=8):
    """x: (B, 6, H, W)  ->  (B, 8, H, W), same semantics as Decoder.forward."""
    B, C, H, W = x.shape
    assert C == 6, "Decoder expects a 6-channel geometry map"
    if H % tile_h != 0:
        tile_h = H            # fall back to one row-tile if H is not 8-aligned

    kernel = functools.partial(
        _decoder_kernel,
        mean=tuple(float(m) for m in target_mean),
        std=tuple(float(s) for s in target_std_dev),
        grid_size=float(grid_size),
        label_h=float(labels_shape[0]),
        tile_h=tile_h,
    )

    grid = (B, H // tile_h)
    return pl.pallas_call(
        kernel,
        out_shape=jax.ShapeDtypeStruct((B, 8, H, W), x.dtype),
        grid=grid,
        in_specs=[pl.BlockSpec((1, 6, tile_h, W), lambda b, i: (b, 0, i, 0))],
        out_specs=pl.BlockSpec((1, 8, tile_h, W), lambda b, i: (b, 0, i, 0)),
        compiler_params=pltpu.CompilerParams(
            dimension_semantics=("parallel", "parallel")),
    )(x)


def decoder_reference(x, *, target_mean, target_std_dev, grid_size, labels_shape):
    """Plain-JAX reference faithful to the PyTorch module (for verification)."""
    mean = jnp.asarray(target_mean, jnp.float32).reshape(1, 6, 1, 1)
    std = jnp.asarray(target_std_dev, jnp.float32).reshape(1, 6, 1, 1)
    x = x * std + mean
    cos_t, sin_t, dx, dy, log_w, log_l = [x[:, i:i + 1] for i in range(6)]
    theta = jnp.arctan2(sin_t, cos_t)
    cos_t, sin_t = jnp.cos(theta), jnp.sin(theta)

    xs = jnp.arange(labels_shape[1], dtype=jnp.float32) * grid_size
    ys = jnp.arange(-labels_shape[0] / 2, labels_shape[0] / 2,
                    dtype=jnp.float32) * grid_size
    yy, xx = jnp.meshgrid(ys, xs, indexing="ij")
    centre_y = yy + dy
    centre_x = xx + dx
    l = jnp.exp(log_l)
    w = jnp.exp(log_w)

    rear_left_x   = centre_x - l / 2 * cos_t - w / 2 * sin_t
    rear_left_y   = centre_y - l / 2 * sin_t + w / 2 * cos_t
    rear_right_x  = centre_x - l / 2 * cos_t + w / 2 * sin_t
    rear_right_y  = centre_y - l / 2 * sin_t - w / 2 * cos_t
    front_right_x = centre_x + l / 2 * cos_t + w / 2 * sin_t
    front_right_y = centre_y + l / 2 * sin_t - w / 2 * cos_t
    front_left_x  = centre_x + l / 2 * cos_t - w / 2 * sin_t
    front_left_y  = centre_y + l / 2 * sin_t + w / 2 * cos_t
    return jnp.concatenate([
        rear_left_x, rear_left_y, rear_right_x, rear_right_y,
        front_right_x, front_right_y, front_left_x, front_left_y], axis=1)


if __name__ == "__main__":
    key = jax.random.PRNGKey(0)

    # Small shapes consistent with the module (real PIXOR uses B x 6 x 200 x 175).
    B, C, H, W = 2, 6, 16, 16
    config = dict(
        grid_size=0.1,
        labels_shape=(H, W, 7),
        target_mean=(0.008, 0.001, 0.202, 0.2, 0.43, 1.368),
        target_std_dev=(0.866, 0.5, 0.954, 0.668, 0.09, 0.111),
    )

    x = jax.random.normal(key, (B, C, H, W), jnp.float32)

    out = decoder_forward(
        x,
        target_mean=config["target_mean"],
        target_std_dev=config["target_std_dev"],
        grid_size=config["grid_size"],
        labels_shape=config["labels_shape"],
    )
    out = jax.block_until_ready(out)

    ref = decoder_reference(
        x,
        target_mean=config["target_mean"],
        target_std_dev=config["target_std_dev"],
        grid_size=config["grid_size"],
        labels_shape=config["labels_shape"],
    )

    assert out.shape == (B, 8, H, W)
    assert jnp.allclose(out, ref, atol=1e-3, rtol=1e-3), "mismatch vs reference"

    print("KERNEL_OK")
</pallas_src>

<mosaic_0001>
module attributes {stable_mosaic.version = 11 : i64} {
  func.func @_decoder_kernel(%arg0: i32, %arg1: i32, %arg2: memref<1x6x8x16xf32, #tpu.memory_space<vmem>>, %arg3: memref<1x8x8x16xf32, #tpu.memory_space<vmem>>) attributes {dimension_semantics = [#tpu.dimension_semantics<parallel>, #tpu.dimension_semantics<parallel>], iteration_bounds = array<i64: 2, 2>, scalar_prefetch = 0 : i64, scratch_operands = 0 : i64, tpu.core_type = #tpu.core_type<tc>, window_params = [{transform_indices = @transform_0, window_bounds = array<i64: 1, 6, 8, 16>}, {transform_indices = @transform_1, window_bounds = array<i64: 1, 8, 8, 16>}]} {
    %c0 = arith.constant 0 : index
    %c0_0 = arith.constant 0 : index
    %c0_1 = arith.constant 0 : index
    %c0_2 = arith.constant 0 : index
    %0 = vector.load %arg2[%c0, %c0_0, %c0_1, %c0_2] : memref<1x6x8x16xf32, #tpu.memory_space<vmem>>, vector<1x6x8x16xf32>
    %1 = vector.extract_strided_slice %0 {offsets = [0, 0, 0, 0], sizes = [1, 1, 8, 16], strides = [1, 1, 1, 1]} : vector<1x6x8x16xf32> to vector<1x1x8x16xf32>
    %2 = vector.shape_cast %1 : vector<1x1x8x16xf32> to vector<1x8x16xf32>
    %cst = arith.constant 0.865999996 : f32
    %3 = vector.broadcast %cst : f32 to vector<1x8x16xf32>
    %4 = arith.mulf %2, %3 : vector<1x8x16xf32>
    %cst_3 = arith.constant 8.000000e-03 : f32
    %5 = vector.broadcast %cst_3 : f32 to vector<1x8x16xf32>
    %6 = arith.addf %4, %5 : vector<1x8x16xf32>
    %7 = vector.extract_strided_slice %0 {offsets = [0, 1, 0, 0], sizes = [1, 1, 8, 16], strides = [1, 1, 1, 1]} : vector<1x6x8x16xf32> to vector<1x1x8x16xf32>
    %8 = vector.shape_cast %7 : vector<1x1x8x16xf32> to vector<1x8x16xf32>
    %cst_4 = arith.constant 5.000000e-01 : f32
    %9 = vector.broadcast %cst_4 : f32 to vector<1x8x16xf32>
    %10 = arith.mulf %8, %9 : vector<1x8x16xf32>
    %cst_5 = arith.constant 1.000000e-03 : f32
    %11 = vector.broadcast %cst_5 : f32 to vector<1x8x16xf32>
    %12 = arith.addf %10, %11 : vector<1x8x16xf32>
    %13 = vector.extract_strided_slice %0 {offsets = [0, 2, 0, 0], sizes = [1, 1, 8, 16], strides = [1, 1, 1, 1]} : vector<1x6x8x16xf32> to vector<1x1x8x16xf32>
    %14 = vector.shape_cast %13 : vector<1x1x8x16xf32> to vector<1x8x16xf32>
    %cst_6 = arith.constant 0.953999996 : f32
    %15 = vector.broadcast %cst_6 : f32 to vector<1x8x16xf32>
    %16 = arith.mulf %14, %15 : vector<1x8x16xf32>
    %cst_7 = arith.constant 2.020000e-01 : f32
    %17 = vector.broadcast %cst_7 : f32 to vector<1x8x16xf32>
    %18 = arith.addf %16, %17 : vector<1x8x16xf32>
    %19 = vector.extract_strided_slice %0 {offsets = [0, 3, 0, 0], sizes = [1, 1, 8, 16], strides = [1, 1, 1, 1]} : vector<1x6x8x16xf32> to vector<1x1x8x16xf32>
    %20 = vector.shape_cast %19 : vector<1x1x8x16xf32> to vector<1x8x16xf32>
    %cst_8 = arith.constant 6.680000e-01 : f32
    %21 = vector.broadcast %cst_8 : f32 to vector<1x8x16xf32>
    %22 = arith.mulf %20, %21 : vector<1x8x16xf32>
    %cst_9 = arith.constant 2.000000e-01 : f32
    %23 = vector.broadcast %cst_9 : f32 to vector<1x8x16xf32>
    %24 = arith.addf %22, %23 : vector<1x8x16xf32>
    %25 = vector.extract_strided_slice %0 {offsets = [0, 4, 0, 0], sizes = [1, 1, 8, 16], strides = [1, 1, 1, 1]} : vector<1x6x8x16xf32> to vector<1x1x8x16xf32>
    %26 = vector.shape_cast %25 : vector<1x1x8x16xf32> to vector<1x8x16xf32>
    %cst_10 = arith.constant 9.000000e-02 : f32
    %27 = vector.broadcast %cst_10 : f32 to vector<1x8x16xf32>
    %28 = arith.mulf %26, %27 : vector<1x8x16xf32>
    %cst_11 = arith.constant 4.300000e-01 : f32
    %29 = vector.broadcast %cst_11 : f32 to vector<1x8x16xf32>
    %30 = arith.addf %28, %29 : vector<1x8x16xf32>
    %31 = vector.extract_strided_slice %0 {offsets = [0, 5, 0, 0], sizes = [1, 1, 8, 16], strides = [1, 1, 1, 1]} : vector<1x6x8x16xf32> to vector<1x1x8x16xf32>
    %32 = vector.shape_cast %31 : vector<1x1x8x16xf32> to vector<1x8x16xf32>
    %cst_12 = arith.constant 1.110000e-01 : f32
    %33 = vector.broadcast %cst_12 : f32 to vector<1x8x16xf32>
    %34 = arith.mulf %32, %33 : vector<1x8x16xf32>
    %cst_13 = arith.constant 1.368000e+00 : f32
    %35 = vector.broadcast %cst_13 : f32 to vector<1x8x16xf32>
    %36 = arith.addf %34, %35 : vector<1x8x16xf32>
    %37 = arith.mulf %6, %6 : vector<1x8x16xf32>
    %38 = arith.mulf %12, %12 : vector<1x8x16xf32>
    %39 = arith.addf %37, %38 : vector<1x8x16xf32>
    %40 = math.rsqrt %39 : vector<1x8x16xf32>
    %41 = arith.mulf %6, %40 : vector<1x8x16xf32>
    %42 = arith.mulf %12, %40 : vector<1x8x16xf32>
    %43 = math.exp %30 : vector<1x8x16xf32>
    %44 = math.exp %36 : vector<1x8x16xf32>
    %c8_i32 = arith.constant 8 : i32
    %45 = arith.muli %arg1, %c8_i32 : i32
    %46 = tpu.iota {dimensions = array<i32: 0>} : vector<8x16xi32>
    %47 = vector.broadcast %45 : i32 to vector<8x16xi32>
    %48 = arith.addi %46, %47 : vector<8x16xi32>
    %49 = arith.sitofp %48 : vector<8x16xi32> to vector<8x16xf32>
    %50 = tpu.iota {dimensions = array<i32: 1>} : vector<8x16xi32>
    %51 = arith.sitofp %50 : vector<8x16xi32> to vector<8x16xf32>
    %cst_14 = arith.constant 8.000000e+00 : f32
    %52 = vector.broadcast %cst_14 : f32 to vector<8x16xf32>
    %53 = arith.subf %49, %52 : vector<8x16xf32>
    %cst_15 = arith.constant 1.000000e-01 : f32
    %54 = vector.broadcast %cst_15 : f32 to vector<8x16xf32>
    %55 = arith.mulf %53, %54 : vector<8x16xf32>
    %cst_16 = arith.constant 1.000000e-01 : f32
    %56 = vector.broadcast %cst_16 : f32 to vector<8x16xf32>
    %57 = arith.mulf %51, %56 : vector<8x16xf32>
    %58 = vector.shape_cast %55 : vector<8x16xf32> to vector<1x8x16xf32>
    %59 = arith.addf %58, %24 : vector<1x8x16xf32>
    %60 = vector.shape_cast %57 : vector<8x16xf32> to vector<1x8x16xf32>
    %61 = arith.addf %60, %18 : vector<1x8x16xf32>
    %cst_17 = arith.constant 5.000000e-01 : f32
    %62 = vector.broadcast %cst_17 : f32 to vector<1x8x16xf32>
    %63 = arith.mulf %62, %44 : vector<1x8x16xf32>
    %64 = arith.mulf %63, %41 : vector<1x8x16xf32>
    %cst_18 = arith.constant 5.000000e-01 : f32
    %65 = vector.broadcast %cst_18 : f32 to vector<1x8x16xf32>
    %66 = arith.mulf %65, %44 : vector<1x8x16xf32>
    %67 = arith.mulf %66, %42 : vector<1x8x16xf32>
    %cst_19 = arith.constant 5.000000e-01 : f32
    %68 = vector.broadcast %cst_19 : f32 to vector<1x8x16xf32>
    %69 = arith.mulf %68, %43 : vector<1x8x16xf32>
    %70 = arith.mulf %69, %41 : vector<1x8x16xf32>
    %cst_20 = arith.constant 5.000000e-01 : f32
    %71 = vector.broadcast %cst_20 : f32 to vector<1x8x16xf32>
    %72 = arith.mulf %71, %43 : vector<1x8x16xf32>
    %73 = arith.mulf %72, %42 : vector<1x8x16xf32>
    %74 = arith.subf %61, %64 : vector<1x8x16xf32>
    %75 = arith.subf %74, %73 : vector<1x8x16xf32>
    %76 = arith.subf %59, %67 : vector<1x8x16xf32>
    %77 = arith.addf %76, %70 : vector<1x8x16xf32>
    %78 = arith.subf %61, %64 : vector<1x8x16xf32>
    %79 = arith.addf %78, %73 : vector<1x8x16xf32>
    %80 = arith.subf %59, %67 : vector<1x8x16xf32>
    %81 = arith.subf %80, %70 : vector<1x8x16xf32>
    %82 = arith.addf %61, %64 : vector<1x8x16xf32>
    %83 = arith.addf %82, %73 : vector<1x8x16xf32>
    %84 = arith.addf %59, %67 : vector<1x8x16xf32>
    %85 = arith.subf %84, %70 : vector<1x8x16xf32>
    %86 = arith.addf %61, %64 : vector<1x8x16xf32>
    %87 = arith.subf %86, %73 : vector<1x8x16xf32>
    %88 = arith.addf %59, %67 : vector<1x8x16xf32>
    %89 = arith.addf %88, %70 : vector<1x8x16xf32>
    %90 = vector.shape_cast %75 : vector<1x8x16xf32> to vector<1x1x8x16xf32>
    %91 = vector.shape_cast %77 : vector<1x8x16xf32> to vector<1x1x8x16xf32>
    %92 = vector.shape_cast %79 : vector<1x8x16xf32> to vector<1x1x8x16xf32>
    %93 = vector.shape_cast %81 : vector<1x8x16xf32> to vector<1x1x8x16xf32>
    %94 = vector.shape_cast %83 : vector<1x8x16xf32> to vector<1x1x8x16xf32>
    %95 = vector.shape_cast %85 : vector<1x8x16xf32> to vector<1x1x8x16xf32>
    %96 = vector.shape_cast %87 : vector<1x8x16xf32> to vector<1x1x8x16xf32>
    %97 = vector.shape_cast %89 : vector<1x8x16xf32> to vector<1x1x8x16xf32>
    %98 = tpu.concatenate %90, %91, %92, %93, %94, %95, %96, %97 in 1 : vector<1x1x8x16xf32>, vector<1x1x8x16xf32>, vector<1x1x8x16xf32>, vector<1x1x8x16xf32>, vector<1x1x8x16xf32>, vector<1x1x8x16xf32>, vector<1x1x8x16xf32>, vector<1x1x8x16xf32> -> vector<1x8x8x16xf32>
    %c0_21 = arith.constant 0 : index
    %c0_22 = arith.constant 0 : index
    %c0_23 = arith.constant 0 : index
    %c0_24 = arith.constant 0 : index
    %99 = vector.load %arg3[%c0_21, %c0_22, %c0_23, %c0_24] : memref<1x8x8x16xf32, #tpu.memory_space<vmem>>, vector<1x8x8x16xf32>
    tpu.vector_store %arg3[%c0_21, %c0_22, %c0_23, %c0_24], %98 {strides = array<i32>} : memref<1x8x8x16xf32, #tpu.memory_space<vmem>>, vector<1x8x8x16xf32>,
    return
  }
  func.func @transform_0(%arg0: i32, %arg1: i32) -> (i32, i32, i32, i32) {
    %c0_i32 = arith.constant 0 : i32
    %c0_i32_0 = arith.constant 0 : i32
    %c0_i32_1 = arith.constant 0 : i32
    return %arg0, %c0_i32, %arg1, %c0_i32_0 : i32, i32, i32, i32
  }
  func.func @transform_1(%arg0: i32, %arg1: i32) -> (i32, i32, i32, i32) {
    %c0_i32 = arith.constant 0 : i32
    %c0_i32_0 = arith.constant 0 : i32
    %c0_i32_1 = arith.constant 0 : i32
    return %arg0, %c0_i32, %arg1, %c0_i32_0 : i32, i32, i32, i32
  }
}

</mosaic_0001>

<llo_original>
// kernel: tpu_custom_call.1
$region0: #{tpu_custom_call.1}
  #allocation0 [shape = 'u32[]', space=smem, size = 0x4, offset = 0x4, fixed_abs, tag = 'smem constant byte address 0x4 - core index']
  #allocation1 [shape = 'u32[144,128]{1,0:T(1,128)}', space=vmem, size = 0x12000, scoped, tag = 'internal scratch']
  %s0 = inlined_call_operand.hbm [shape: f32[2,6,16,16], index: 0, kind: input, shape index: {}]
  %s1 = inlined_call_operand.hbm [shape: f32[2,8,16,16], index: 1, kind: output, shape index: {}]
  %s2 = sld [smem:[#allocation0]]
  $region41: #{tpu_custom_call.1} parent=0
    _
  %s4 = ssub.s32 1, %s2
  %s5 = scalar_select 0, %s4, %s2
  $region1: #{tpu_custom_call.1} parent=0
    #allocation2 [shape = 'u8[49152]{0}', space=vmem, size = 0xc000, scoped, tag = 'input window, operand 0']
    #allocation3 [shape = 's32[2]{0}', space=sflag, size = 0x8, scoped, tag = 'scoped memory for tpu_custom_call.1']
    #allocation4 [shape = 's32[2]{0}', space=sflag, size = 0x8, scoped, tag = 'scoped memory for tpu_custom_call.1']
    #allocation5 [shape = 'u8[65536]{0}', space=vmem, size = 0x10000, scoped, tag = 'output window, operand 0']
    %6 = vsyncpa [#allocation3], 0
    %s7 = scalar_lea.sflag [#allocation3], 1
    %8 = vsyncpa %s7, 0
    %9 = vsyncpa [#allocation4], 0
    %s10 = scalar_lea.sflag [#allocation4], 1
    %11 = vsyncpa %s10, 0
    loop: start=0, step=1, limit=6
    $region2: #{tpu_custom_call.1} parent=1 // loop_pre_header
      _
    $region3: #{tpu_custom_call.1} parent=1 // loop_header
      %s13 = sphi 0, %s17
      %p14 = scmp.ge.s32.totalorder %s13, 6
      %s20 = sphi 0, %s32
      %s21 = sphi 0, %s28
      %s22 = sphi 0, %s20
      %s23 = sphi 0, %s21
      %s24 = sphi 0, %s22
      %s25 = sphi 0, %s23
      %s37 = sphi 0, %s39
      %s40 = sphi 0, %s37
      %s41 = sphi 0, %s40
      %s57 = sphi 0, %s41
      %s65 = sphi 0, %s67
      %s68 = sphi 0, %s65
      %s69 = sphi 0, %s68
      %s85 = sphi 0, %s69
    $region4: #{tpu_custom_call.1} parent=1 // loop_header_branch
      %16 = sbr.rel (%p14) target = $region8
    $region5: #{tpu_custom_call.1} parent=1 // loop_body
      %s18 = ssub.s32 %s13, 1
      %s19 = ssub.s32 %s13, 2
      %s26 = sadd.s32 1, %s21
      %p27 = scmp.ge.s32.totalorder %s26, 2
      %s28 = scalar_select %p27, 0, %s26
      %s29 = sadd.s32 1, %s20
      %s30 = scalar_select %p27, %s29, %s20
      %p31 = scmp.ge.s32.totalorder %s30, 2
      %s32 = scalar_select %p31, 0, %s30
      %s33 = ssub.s32 %s20, %s32
      %s34 = ssub.s32 %s21, %s28
      %s35 = sor.u32 %s33, %s34
      %p36 = scmp.eq.s32.totalorder %s35, 0
      %s38 = sadd.s32 %s37, 1
      %s39 = scalar_select %p36, %s37, %s38
      %p42 = pneg %p36
      %p43 = scmp.eq.s32.totalorder %s13, 3
      %p44 = por %p42, %p43
      %p45 = scmp.ne.s32.totalorder %s37, %s40
      %p46 = scmp.eq.s32.totalorder %s13, 0
      %p47 = por %p45, %p46
      %p48 = scmp.ne.s32.totalorder %s37, %s40
      %p49 = scmp.eq.s32.totalorder %s18, 3
      %p50 = por %p48, %p49
      %p51 = scmp.ne.s32.totalorder %s40, %s41
      %p52 = scmp.eq.s32.totalorder %s18, 0
      %p53 = por %p51, %p52
      %p54 = scmp.ne.s32.totalorder %s40, %s41
      %p55 = scmp.eq.s32.totalorder %s19, 3
      %p56 = por %p54, %p55
      %p58 = scmp.ne.s32.totalorder %s41, %s57
      %p59 = scmp.eq.s32.totalorder %s19, 0
      %p60 = por %p58, %p59
      %s61 = ssub.s32 %s20, %s32
      %s62 = ssub.s32 %s21, %s28
      %s63 = sor.u32 %s61, %s62
      %p64 = scmp.eq.s32.totalorder %s63, 0
      %s66 = sadd.s32 %s65, 1
      %s67 = scalar_select %p64, %s65, %s66
      %p70 = pneg %p64
      %p71 = scmp.eq.s32.totalorder %s13, 3
      %p72 = por %p70, %p71
      %p73 = scmp.ne.s32.totalorder %s65, %s68
      %p74 = scmp.eq.s32.totalorder %s13, 0
      %p75 = por %p73, %p74
      %p76 = scmp.ne.s32.totalorder %s65, %s68
      %p77 = scmp.eq.s32.totalorder %s18, 3
      %p78 = por %p76, %p77
      %p79 = scmp.ne.s32.totalorder %s68, %s69
      %p80 = scmp.eq.s32.totalorder %s18, 0
      %p81 = por %p79, %p80
      %p82 = scmp.ne.s32.totalorder %s68, %s69
      %p83 = scmp.eq.s32.totalorder %s19, 3
      %p84 = por %p82, %p83
      %p86 = scmp.ne.s32.totalorder %s69, %s85
      %p87 = scmp.eq.s32.totalorder %s19, 0
      %p88 = por %p86, %p87
      %p89 = scmp.le.s32.totalorder 1, %s13
      %p90 = scmp.lt.s32.totalorder %s13, 5
      %p91 = pnand %p89, %p90
      %p92 = pneg %p91
      // Predicated region
      $region9: #{tpu_custom_call.1} parent=5 // pred_check
        _
      $region10: #{tpu_custom_call.1} parent=5 // pred_check_branch
        %94 = sbr.rel (%p91) target = $region12
      $region11: #{tpu_custom_call.1} parent=5 // pred_region
        %s95 = ssub.s32 %s13, 1
      $region12: #{tpu_custom_call.1} parent=5 // pred_fallthru
        _
      %p96 = scmp.lt.s32.totalorder %s13, 4
      // Predicated region
      $region13: #{tpu_custom_call.1} parent=5 // pred_check
        %p97 = pneg %p96
      $region14: #{tpu_custom_call.1} parent=5 // pred_check_branch
        %99 = sbr.rel (%p97) target = $region16
      $region15: #{tpu_custom_call.1} parent=5 // pred_region
        // Predicated region
        $region17: #{tpu_custom_call.1} parent=15 // pred_check
          %p100 = pneg %p47
        $region18: #{tpu_custom_call.1} parent=15 // pred_check_branch
          %102 = sbr.rel (%p100) target = $region20
        $region19: #{tpu_custom_call.1} parent=15 // pred_region
          %s103 = sand.u32 %s37, 1
          %s104 = scalar_lea.sflag [#allocation3], %s103
          %s105 = sand.u32 %s37, 1
          %s106 = smul.addr %s105, 48
          %s107 = scalar_lea.vmem [#allocation2], %s106
          %s109 = ssub.s32 768, 768
          %110 = vsyncadd %s104, %s109
          %s111 = smul.addr %s20, 12
          %s112 = sadd.s32 %s21, %s111
          %s113 = smul.addr %s112, 128
          %s114 = scalar_lea.hbm %s0, %s113
          %s115 = sshll.u32 %s107, 4
          %s116 = int_to_ptr.vmem [resolvable:$true] %s115
          %121 = dma.hbm_to_vmem [thread:$0]  %s114, 768, %s116, %s104, 256, 128, 8
        $region20: #{tpu_custom_call.1} parent=15 // pred_fallthru
          _
      $region16: #{tpu_custom_call.1} parent=5 // pred_fallthru
        _
      %p122 = scmp.le.s32.totalorder 1, %s13
      %p123 = scmp.lt.s32.totalorder %s13, 5
      %p124 = pnand %p122, %p123
      %p125 = pneg %p124
      // Predicated region
      $region21: #{tpu_custom_call.1} parent=5 // pred_check
        _
      $region22: #{tpu_custom_call.1} parent=5 // pred_check_branch
        %127 = sbr.rel (%p124) target = $region24
      $region23: #{tpu_custom_call.1} parent=5 // pred_region
        %s128 = ssub.s32 %s13, 1
        %s129 = sand.u32 %s40, 1
        %s130 = scalar_lea.sflag [#allocation3], %s129
        %s131 = sand.u32 %s40, 1
        %s132 = smul.addr %s131, 48
        %s133 = scalar_lea.vmem [#allocation2], %s132
        // Predicated region
        $region25: #{tpu_custom_call.1} parent=23 // pred_check
          %p134 = pneg %p53
        $region26: #{tpu_custom_call.1} parent=23 // pred_check_branch
          %136 = sbr.rel (%p134) target = $region28
        $region27: #{tpu_custom_call.1} parent=23 // pred_region
          %137 = dma.done %s130, 768
        $region28: #{tpu_custom_call.1} parent=23 // pred_fallthru
          _
        %s138 = sand.u32 %s40, 1
        %s139 = scalar_lea.sflag [#allocation3], %s138
        %s140 = sand.u32 %s40, 1
        %s141 = smul.addr %s140, 48
        %s142 = scalar_lea.vmem [#allocation2], %s141
        %p143 = pneg %p53
        %p144 = pneg %p50
        %p145 = pneg %p81
        %p146 = pneg %p78
        %s147 = sand.u32 %s68, 1
        %s148 = scalar_lea.sflag [#allocation4], %s147
        %s149 = sand.u32 %s68, 1
        %s150 = smul.addr %s149, 64
        %s151 = scalar_lea.vmem [#allocation5], %s150
        %v152 = vld [vmem:[%s133] sm:$0xff]
        %v153 = vld [vmem:[%s133 + $0x8] sm:$0xff]
        %v154 = vld [vmem:[%s133 + $0x10] sm:$0xff]
        %v155 = vld [vmem:[%s133 + $0x18] sm:$0xff]
        %v156 = vld [vmem:[%s133 + $0x20] sm:$0xff]
        %v157 = vld [vmem:[%s133 + $0x28] sm:$0xff]
        %v158 = vmul.f32 %v152, 0.866
        %v159 = vadd.f32 %v158, 0.008
        %v160 = vmul.f32 %v153, 0.5
        %v161 = vadd.f32 %v160, 0.001
        %v162 = vmul.f32 %v154, 0.954
        %v163 = vadd.f32 %v162, 0.202
        %v164 = vmul.f32 %v155, 0.668
        %v165 = vadd.f32 %v164, 0.2
        %v166 = vmul.f32 %v156, 0.09
        %v167 = vadd.f32 %v166, 0.43
        %v168 = vmul.f32 %v157, 0.111
        %v169 = vadd.f32 %v168, 1.368
        %v170 = vmul.f32 %v159, %v159
        %v171 = vmul.f32 %v161, %v161
        %v172 = vadd.f32 %v170, %v171
        %v173 = vrsqrt.pop %v172
        %v174 = vmul.f32 %v159, %v173
        %v175 = vmul.f32 %v161, %v173
        %v176 = vmul.f32 %v167, 1.442695
        %v177 = vpow.pop %v176
        %v178 = vmul.f32 %v169, 1.442695
        %v179 = vpow.pop %v178
        %s180 = smul.u32 %s23, 8
        %v181 = vlaneseq
        %v182 = vshrl.u32 %v181, 7
        %v183 = vstv %s180
        %v184 = vadd.s32 %v182, %v183
        %v185 = vcvt.s32.f32 %v184
        %v186 = vlaneseq
        %v187 = vand.u32 %v186, 127
        %v188 = vcvt.s32.f32 %v187
        %v189 = vsub.f32 %v185, 8.0
        %v190 = vmul.f32 %v189, 0.1
        %v191 = vmul.f32 %v188, 0.1
        %v192 = vadd.f32 %v190, %v165
        %v193 = vadd.f32 %v191, %v163
        %v194 = vmul.f32 %v179, 0.5
        %v195 = vmul.f32 %v194, %v174
        %v196 = vmul.f32 %v194, %v175
        %v197 = vmul.f32 %v177, 0.5
        %v198 = vmul.f32 %v197, %v174
        %v199 = vmul.f32 %v197, %v175
        %v200 = vsub.f32 %v193, %v195
        %v201 = vsub.f32 %v200, %v199
        %v202 = vsub.f32 %v192, %v196
        %v203 = vadd.f32 %v202, %v198
        %v204 = vadd.f32 %v200, %v199
        %v205 = vsub.f32 %v202, %v198
        %v206 = vadd.f32 %v193, %v195
        %v207 = vadd.f32 %v206, %v199
        %v208 = vadd.f32 %v192, %v196
        %v209 = vsub.f32 %v208, %v198
        %v210 = vsub.f32 %v206, %v199
        %v211 = vadd.f32 %v208, %v198
        %vm212 = vcmask 130048
        %213 = vst.msk [vmem:[%s151] sm:$0xff] %vm212, %v201
        %214 = vst.msk [vmem:[%s151 + $0x8] sm:$0xff] %vm212, %v203
        %215 = vst.msk [vmem:[%s151 + $0x10] sm:$0xff] %vm212, %v204
        %216 = vst.msk [vmem:[%s151 + $0x18] sm:$0xff] %vm212, %v205
        %217 = vst.msk [vmem:[%s151 + $0x20] sm:$0xff] %vm212, %v207
        %218 = vst.msk [vmem:[%s151 + $0x28] sm:$0xff] %vm212, %v209
        %219 = vst.msk [vmem:[%s151 + $0x30] sm:$0xff] %vm212, %v210
        %220 = vst.msk [vmem:[%s151 + $0x38] sm:$0xff] %vm212, %v211
        %s221 = sand.u32 %s68, 1
        %s222 = scalar_lea.sflag [#allocation4], %s221
        %s223 = sand.u32 %s68, 1
        %s224 = smul.addr %s223, 64
        %s225 = scalar_lea.vmem [#allocation5], %s224
        // Predicated region
        $region29: #{tpu_custom_call.1} parent=23 // pred_check
          %p226 = pneg %p78
        $region30: #{tpu_custom_call.1} parent=23 // pred_check_branch
          %228 = sbr.rel (%p226) target = $region32
        $region31: #{tpu_custom_call.1} parent=23 // pred_region
          %s230 = ssub.s32 1024, 1024
          %231 = vsyncadd %s222, %s230
          %s232 = smul.addr %s22, 16
          %s233 = sadd.s32 %s23, %s232
          %s234 = smul.addr %s233, 128
          %s235 = scalar_lea.hbm %s1, %s234
          %s236 = sshll.u32 %s225, 4
          %s237 = int_to_ptr.vmem [resolvable:$true] %s236
          %242 = dma.vmem_to_hbm [thread:$0]  %s237, 1024, %s235, %s222, 128, 256, 8
        $region32: #{tpu_custom_call.1} parent=23 // pred_fallthru
          _
      $region24: #{tpu_custom_call.1} parent=5 // pred_fallthru
        _
      %p243 = scmp.le.s32.totalorder 2, %s13
      // Predicated region
      $region33: #{tpu_custom_call.1} parent=5 // pred_check
        %p244 = pneg %p243
      $region34: #{tpu_custom_call.1} parent=5 // pred_check_branch
        %246 = sbr.rel (%p244) target = $region36
      $region35: #{tpu_custom_call.1} parent=5 // pred_region
        %s247 = ssub.s32 %s13, 2
        // Predicated region
        $region37: #{tpu_custom_call.1} parent=35 // pred_check
          %p248 = pneg %p84
        $region38: #{tpu_custom_call.1} parent=35 // pred_check_branch
          %250 = sbr.rel (%p248) target = $region40
        $region39: #{tpu_custom_call.1} parent=35 // pred_region
          %s251 = sand.u32 %s69, 1
          %s252 = scalar_lea.sflag [#allocation4], %s251
          %s253 = sand.u32 %s69, 1
          %s254 = smul.addr %s253, 64
          %s255 = scalar_lea.vmem [#allocation5], %s254
          %256 = dma.done %s252, 1024
        $region40: #{tpu_custom_call.1} parent=35 // pred_fallthru
          _
      $region36: #{tpu_custom_call.1} parent=5 // pred_fallthru
        _
    $region6: #{tpu_custom_call.1} parent=1 // loop_footer
      %s17 = sadd.s32 1, %s13
    $region7: #{tpu_custom_call.1} parent=1 // loop_footer_branch
      %12 = sbr.rel target = $region3
    $region8: #{tpu_custom_call.1} parent=1 // loop_exit
      _
    %257 = vsyncpa [#allocation3], 1
    %s258 = scalar_lea.sflag [#allocation3], 1
    %259 = vsyncpa %s258, 1
    %260 = vsyncpa [#allocation4], 1
    %s261 = scalar_lea.sflag [#allocation4], 1
    %262 = vsyncpa %s261, 1

</llo_original>
